<compile_context>
chip_gen: v7x
topology: tpu7x:2x2x1
jax: 0.10.0
libtpu: 0.0.40
codegen_flags: <defaults>
</compile_context>

<pallas_src>
import functools
import math

import jax
import jax.numpy as jnp
from jax import lax
from jax.experimental import pallas as pl
from jax.experimental.pallas import tpu as pltpu

LANE = 128
SUBLANE = 8
MAX_TM = 512          # M tile cap (review: 128 was too small for tiny K)
MAX_TN = 256          # matches the 256x256 bf16 MXU on v6e/v7x
MAX_SINGLE_K = 2048   # largest K kept as a single (un-tiled) reduction block
TK_TILE = 1024        # K tile when K > MAX_SINGLE_K


def _round_up(x, m):
    return ((x + m - 1) // m) * m


def _k_tiling(k):
    """(TK, Kp): K-tile size and padded K such that TK divides Kp exactly."""
    if k <= MAX_SINGLE_K:
        return k, k
    return TK_TILE, _round_up(k, TK_TILE)


# ----------------------------------------------------------------------------
# Pallas kernel: tiled GEMM + folded-BN scale/shift + optional ReLU epilogue
# ----------------------------------------------------------------------------
def _gemm_bn_act_kernel(x_ref, w_ref, scale_ref, shift_ref, o_ref, acc_ref, *,
                        apply_relu):
    """One (group, m, n, k) grid step of y = act((x @ w) * scale + shift)."""
    k = pl.program_id(3)

    @pl.when(k == 0)
    def _init():
        acc_ref[...] = jnp.zeros_like(acc_ref)

    acc_ref[...] += jnp.dot(x_ref[...], w_ref[...],
                            preferred_element_type=jnp.float32)

    @pl.when(k == pl.num_programs(3) - 1)
    def _epilogue():
        y = acc_ref[...] * scale_ref[...] + shift_ref[...]   # (1, TN) broadcast
        if apply_relu:
            y = jnp.maximum(y, 0.0)
        o_ref[...] = y.astype(o_ref.dtype)


def fused_group_gemm_bn_act(x, w, scale, shift, *, relu,
                            out_dtype=jnp.float32):
    """y[g] = [relu]((x[g] @ w[g]) * scale[g] + shift[g]) for every group g.

    x: (G, M, K)  activations (used as bf16 on the MXU)
    w: (G, Kw, N) weights, Kw <= K (extra K rows are zero-padded)
    scale, shift: (G, N) f32 folded BN scale/shift (+ conv bias)
    returns: (G, M, N) out_dtype
    """
    G, M, K = x.shape
    Gw, Kw, N = w.shape
    assert G == Gw and Kw <= K and M >= 1

    # ---- tiling -------------------------------------------------------------
    TK, Kp = _k_tiling(K)
    n128 = _round_up(N, LANE)
    TN = MAX_TN if n128 >= MAX_TN else n128
    Np = _round_up(N, TN)
    TM = min(_round_up(M, SUBLANE), MAX_TM)
    n_m, n_n, n_k = pl.cdiv(M, TM), Np // TN, Kp // TK

    # ---- operand prep (bf16 MXU operands, lane-dense padded N) --------------
    xb = x.astype(jnp.bfloat16)
    if Kp != K:                        # only for un-aligned direct callers
        xb = jnp.pad(xb, ((0, 0), (0, 0), (0, Kp - K)))
    wb = w.astype(jnp.bfloat16)
    if Kp != Kw or Np != N:
        wb = jnp.pad(wb, ((0, 0), (0, Kp - Kw), (0, Np - N)))
    if Np != N:
        scale = jnp.pad(scale, ((0, 0), (0, Np - N)))
        shift = jnp.pad(shift, ((0, 0), (0, Np - N)))
    scale3 = scale.reshape(G, 1, Np).astype(jnp.float32)
    shift3 = shift.reshape(G, 1, Np).astype(jnp.float32)

    # ---- VMEM budget / cost hint --------------------------------------------
    out_isz = jnp.dtype(out_dtype).itemsize
    vmem_est = (2 * TM * TK * 2 + 2 * TK * TN * 2      # x, w (double-buffered)
                + 2 * 2 * TN * 4                       # scale, shift
                + 2 * TM * TN * out_isz                # output blocks
                + TM * TN * 4)                         # f32 accumulator
    vmem_limit = int(min(max(2 * vmem_est, 32 * 1024 * 1024),
                         100 * 1024 * 1024))
    cost = pl.CostEstimate(
        flops=2 * G * M * Kp * Np,
        transcendentals=0,
        bytes_accessed=int(xb.size * 2 + wb.size * 2
                           + (scale3.size + shift3.size) * 4
                           + G * M * Np * out_isz),
    )

    out = pl.pallas_call(
        functools.partial(_gemm_bn_act_kernel, apply_relu=relu),
        out_shape=jax.ShapeDtypeStruct((G, M, Np), out_dtype),
        grid=(G, n_m, n_n, n_k),
        in_specs=[
            pl.BlockSpec((None, TM, TK), lambda g, i, j, k: (g, i, k)),
            pl.BlockSpec((None, TK, TN), lambda g, i, j, k: (g, k, j)),
            pl.BlockSpec((None, 1, TN), lambda g, i, j, k: (g, 0, j)),
            pl.BlockSpec((None, 1, TN), lambda g, i, j, k: (g, 0, j)),
        ],
        out_specs=pl.BlockSpec((None, TM, TN), lambda g, i, j, k: (g, i, j)),
        scratch_shapes=[pltpu.VMEM((TM, TN), jnp.float32)],
        compiler_params=pltpu.CompilerParams(
            dimension_semantics=("parallel", "parallel", "parallel",
                                 "arbitrary"),
            vmem_limit_bytes=vmem_limit),
        cost_estimate=cost,
    )(xb, wb, scale3, shift3)
    return out if Np == N else out[..., :N]


# ----------------------------------------------------------------------------
# Glue: im2col (stride / padding / dilation), NHWC, with optional K zero-pad
# folded into the single concatenate (no extra HBM round trip).
# ----------------------------------------------------------------------------
def _im2col(x, kh, kw, stride, padding, dilation, k_pad=0):
    B, H, W, C = x.shape
    Ho = (H + 2 * padding - dilation * (kh - 1) - 1) // stride + 1
    Wo = (W + 2 * padding - dilation * (kw - 1) - 1) // stride + 1
    xp = jnp.pad(x, ((0, 0), (padding, padding), (padding, padding), (0, 0)))
    cols = []
    for i in range(kh):
        for j in range(kw):
            hi, wj = i * dilation, j * dilation
            cols.append(xp[:, hi:hi + stride * (Ho - 1) + 1:stride,
                           wj:wj + stride * (Wo - 1) + 1:stride, :])
    if k_pad:
        cols.append(jnp.zeros((B, Ho, Wo, k_pad), x.dtype))
    return jnp.concatenate(cols, axis=-1), Ho, Wo


# ----------------------------------------------------------------------------
# BasicConv module (Pallas)
# ----------------------------------------------------------------------------
class BasicConvPallas:
    """Conv2d -> BatchNorm2d(eval, folded) -> ReLU, matching BasicConv."""

    def __init__(self, key, in_planes, out_planes, kernel_size, stride=1,
                 padding=0, dilation=1, groups=1, relu=True, bn=True,
                 bias=False, out_dtype=jnp.float32):
        assert in_planes % groups == 0 and out_planes % groups == 0
        self.out_channels = out_planes
        self.stride, self.padding = stride, padding
        self.dilation, self.groups = dilation, groups
        self.relu, self.use_bn = relu, bn
        self.kh = self.kw = kernel_size
        self.out_dtype = out_dtype

        fan_in = (in_planes // groups) * kernel_size * kernel_size
        bound = 1.0 / math.sqrt(fan_in)
        k1, k2, k3, k4, k5, k6 = jax.random.split(key, 6)
        # HWIO weights (kh, kw, Cin//groups, Cout); cross-correlation semantics
        # match PyTorch nn.Conv2d.
        self.w = jax.random.uniform(k1, (self.kh, self.kw,
                                         in_planes // groups, out_planes),
                                    jnp.float32, -bound, bound)
        self.b = (jax.random.uniform(k2, (out_planes,), jnp.float32,
                                     -bound, bound) if bias else None)
        if bn:
            self.eps = 1e-5
            # Non-trivial stats/affine so the fused scale/shift path is
            # actually exercised.
            self.gamma = 1.0 + 0.1 * jax.random.normal(k3, (out_planes,),
                                                       jnp.float32)
            self.beta = 0.1 * jax.random.normal(k4, (out_planes,), jnp.float32)
            self.running_mean = 0.1 * jax.random.normal(k5, (out_planes,),
                                                        jnp.float32)
            self.running_var = jax.random.uniform(k6, (out_planes,),
                                                  jnp.float32, 0.5, 1.5)

    def folded_scale_shift(self):
        cout = self.out_channels
        if self.use_bn:
            scale = self.gamma / jnp.sqrt(self.running_var + self.eps)
            shift = self.beta - self.running_mean * scale
        else:
            scale = jnp.ones((cout,), jnp.float32)
            shift = jnp.zeros((cout,), jnp.float32)
        if self.b is not None:
            shift = shift + self.b * scale
        return scale, shift

    def __call__(self, x_nchw):
        # bf16 BEFORE im2col: the kh*kw-replicated patches buffer is written
        # and read in bf16 (review item: halves the dominant HBM traffic).
        x = jnp.transpose(x_nchw, (0, 2, 3, 1)).astype(jnp.bfloat16)  # NHWC
        B, _, _, C = x.shape
        g = self.groups
        cin_g = C // g
        cout_g = self.out_channels // g
        K = self.kh * self.kw * cin_g
        _, Kp = _k_tiling(K)  # any K padding is folded into the im2col concat

        plist, Ho, Wo = [], None, None
        for gi in range(g):
            xg = x[..., gi * cin_g:(gi + 1) * cin_g]
            p, Ho, Wo = _im2col(xg, self.kh, self.kw, self.stride,
                                self.padding, self.dilation, k_pad=Kp - K)
            plist.append(p.reshape(B * Ho * Wo, Kp))
        patches = jnp.stack(plist, axis=0)                     # (G, M, Kp)

        wg = self.w.reshape(K, g, cout_g).transpose(1, 0, 2)   # (G, K, Cout_g)
        scale, shift = self.folded_scale_shift()

        y = fused_group_gemm_bn_act(
            patches, wg, scale.reshape(g, cout_g), shift.reshape(g, cout_g),
            relu=self.relu, out_dtype=self.out_dtype)          # (G, M, Cout_g)

        y = jnp.transpose(y, (1, 0, 2)).reshape(B, Ho, Wo, g * cout_g)
        return jnp.transpose(y, (0, 3, 1, 2))                  # NHWC -> NCHW


# ----------------------------------------------------------------------------
# Pure-JAX reference (same bf16 MXU operands, f32 accumulation) for checking
# ----------------------------------------------------------------------------
def basic_conv_reference(m, x_nchw):
    x = jnp.transpose(x_nchw, (0, 2, 3, 1)).astype(jnp.bfloat16)
    w = m.w.astype(jnp.bfloat16)
    y = lax.conv_general_dilated(
        x, w,
        window_strides=(m.stride, m.stride),
        padding=[(m.padding, m.padding), (m.padding, m.padding)],
        rhs_dilation=(m.dilation, m.dilation),
        dimension_numbers=("NHWC", "HWIO", "NHWC"),
        feature_group_count=m.groups,
        preferred_element_type=jnp.float32)
    scale, shift = m.folded_scale_shift()
    y = y * scale + shift
    if m.relu:
        y = jnp.maximum(y, 0.0)
    return jnp.transpose(y, (0, 3, 1, 2))


if __name__ == "__main__":
    key = jax.random.PRNGKey(0)
    k_model, k_model2, k_data = jax.random.split(key, 3)

    x = jax.random.normal(k_data, (2, 4, 16, 16), jnp.float32)  # NCHW

    # BasicConv(4, 16, kernel_size=3, stride=1, padding=1, bn=True, relu=True)
    conv = BasicConvPallas(k_model, in_planes=4, out_planes=16, kernel_size=3,
                           stride=1, padding=1, dilation=1, groups=1,
                           relu=True, bn=True, bias=False)
    y = conv(x)
    jax.block_until_ready(y)
    assert y.shape == (2, 16, 16, 16), y.shape
    y_ref = basic_conv_reference(conv, x)
    err = float(jnp.max(jnp.abs(y - y_ref)))
    assert jnp.allclose(y, y_ref, atol=2e-3, rtol=2e-3), err

    # Grouped / strided / biased / no-ReLU variant exercises the group grid
    # axis and the folded-bias path.
    conv2 = BasicConvPallas(k_model2, in_planes=4, out_planes=16,
                            kernel_size=3, stride=2, padding=1, dilation=1,
                            groups=2, relu=False, bn=True, bias=True)
    y2 = conv2(x)
    jax.block_until_ready(y2)
    assert y2.shape == (2, 16, 8, 8), y2.shape
    y2_ref = basic_conv_reference(conv2, x)
    err2 = float(jnp.max(jnp.abs(y2 - y2_ref)))
    assert jnp.allclose(y2, y2_ref, atol=2e-3, rtol=2e-3), err2

    print("KERNEL_OK")
</pallas_src>

<mosaic_0001>
module attributes {stable_mosaic.version = 11 : i64} {
  func.func @_gemm_bn_act_kernel(%arg0: i32, %arg1: i32, %arg2: i32, %arg3: i32, %arg4: memref<1x512x36xbf16, #tpu.memory_space<vmem>>, %arg5: memref<1x36x128xbf16, #tpu.memory_space<vmem>>, %arg6: memref<1x1x128xf32, #tpu.memory_space<vmem>>, %arg7: memref<1x1x128xf32, #tpu.memory_space<vmem>>, %arg8: memref<1x512x128xf32, #tpu.memory_space<vmem>>, %arg9: memref<512x128xf32, #tpu.memory_space<vmem>>) attributes {dimension_semantics = [#tpu.dimension_semantics<parallel>, #tpu.dimension_semantics<parallel>, #tpu.dimension_semantics<parallel>, #tpu.dimension_semantics<arbitrary>], iteration_bounds = array<i64: 1, 1, 1, 1>, scalar_prefetch = 0 : i64, scratch_operands = 1 : i64, tpu.core_type = #tpu.core_type<tc>, window_params = [{transform_indices = @transform_0, window_bounds = array<i64: 1, 512, 36>}, {transform_indices = @transform_1, window_bounds = array<i64: 1, 36, 128>}, {transform_indices = @transform_2, window_bounds = array<i64: 1, 1, 128>}, {transform_indices = @transform_3, window_bounds = array<i64: 1, 1, 128>}, {transform_indices = @transform_4, window_bounds = array<i64: 1, 512, 128>}]} {
    %c0_i32 = arith.constant 0 : i32
    %0 = arith.cmpi eq, %arg3, %c0_i32 : i32
    %1 = arith.extui %0 : i1 to i32
    %c0_i32_0 = arith.constant 0 : i32
    %2 = arith.cmpi ne, %1, %c0_i32_0 : i32
    scf.if %2 {
      %cst_12 = arith.constant 0.000000e+00 : f32
      %14 = vector.broadcast %cst_12 : f32 to vector<512x128xf32>
      %c0_13 = arith.constant 0 : index
      %c0_14 = arith.constant 0 : index
      %15 = vector.load %arg9[%c0_13, %c0_14] : memref<512x128xf32, #tpu.memory_space<vmem>>, vector<512x128xf32>
      tpu.vector_store %arg9[%c0_13, %c0_14], %14 {strides = array<i32>} : memref<512x128xf32, #tpu.memory_space<vmem>>, vector<512x128xf32>,
    } else {
    }
    %c0 = arith.constant 0 : index
    %c0_1 = arith.constant 0 : index
    %3 = vector.load %arg9[%c0, %c0_1] : memref<512x128xf32, #tpu.memory_space<vmem>>, vector<512x128xf32>
    %c0_2 = arith.constant 0 : index
    %c0_3 = arith.constant 0 : index
    %c0_4 = arith.constant 0 : index
    %4 = vector.load %arg4[%c0_2, %c0_3, %c0_4] : memref<1x512x36xbf16, #tpu.memory_space<vmem>>, vector<1x512x36xbf16>
    %5 = vector.shape_cast %4 : vector<1x512x36xbf16> to vector<512x36xbf16>
    %c0_5 = arith.constant 0 : index
    %c0_6 = arith.constant 0 : index
    %c0_7 = arith.constant 0 : index
    %6 = vector.load %arg5[%c0_5, %c0_6, %c0_7] : memref<1x36x128xbf16, #tpu.memory_space<vmem>>, vector<1x36x128xbf16>
    %7 = vector.shape_cast %6 : vector<1x36x128xbf16> to vector<36x128xbf16>
    %cst = arith.constant dense<0.000000e+00> : vector<512x128xf32>
    %8 = tpu.matmul %5, %7, %cst {dimension_numbers = #tpu.dot_dimension_numbers<[1], [0], [0], [1], [0, 0, 1, 1], [], []>} : vector<512x36xbf16>, vector<36x128xbf16>, vector<512x128xf32> -> vector<512x128xf32>
    %9 = arith.addf %3, %8 : vector<512x128xf32>
    %c0_8 = arith.constant 0 : index
    %c0_9 = arith.constant 0 : index
    %10 = vector.load %arg9[%c0_8, %c0_9] : memref<512x128xf32, #tpu.memory_space<vmem>>, vector<512x128xf32>
    tpu.vector_store %arg9[%c0_8, %c0_9], %9 {strides = array<i32>} : memref<512x128xf32, #tpu.memory_space<vmem>>, vector<512x128xf32>,
    %c0_i32_10 = arith.constant 0 : i32
    %11 = arith.cmpi eq, %arg3, %c0_i32_10 : i32
    %12 = arith.extui %11 : i1 to i32
    %c0_i32_11 = arith.constant 0 : i32
    %13 = arith.cmpi ne, %12, %c0_i32_11 : i32
    scf.if %13 {
      %c0_12 = arith.constant 0 : index
      %c0_13 = arith.constant 0 : index
      %14 = vector.load %arg9[%c0_12, %c0_13] : memref<512x128xf32, #tpu.memory_space<vmem>>, vector<512x128xf32>
      %c0_14 = arith.constant 0 : index
      %c0_15 = arith.constant 0 : index
      %c0_16 = arith.constant 0 : index
      %15 = vector.load %arg6[%c0_14, %c0_15, %c0_16] : memref<1x1x128xf32, #tpu.memory_space<vmem>>, vector<1x1x128xf32>
      %16 = vector.shape_cast %15 : vector<1x1x128xf32> to vector<1x128xf32>
      %17 = vector.broadcast %16 : vector<1x128xf32> to vector<512x128xf32>
      %18 = arith.mulf %14, %17 : vector<512x128xf32>
      %c0_17 = arith.constant 0 : index
      %c0_18 = arith.constant 0 : index
      %c0_19 = arith.constant 0 : index
      %19 = vector.load %arg7[%c0_17, %c0_18, %c0_19] : memref<1x1x128xf32, #tpu.memory_space<vmem>>, vector<1x1x128xf32>
      %20 = vector.shape_cast %19 : vector<1x1x128xf32> to vector<1x128xf32>
      %21 = vector.broadcast %20 : vector<1x128xf32> to vector<512x128xf32>
      %22 = arith.addf %18, %21 : vector<512x128xf32>
      %cst_20 = arith.constant 0.000000e+00 : f32
      %23 = vector.broadcast %cst_20 : f32 to vector<512x128xf32>
      %24 = arith.maximumf %22, %23 : vector<512x128xf32>
      %c0_21 = arith.constant 0 : index
      %c0_22 = arith.constant 0 : index
      %c0_23 = arith.constant 0 : index
      %25 = vector.load %arg8[%c0_21, %c0_22, %c0_23] : memref<1x512x128xf32, #tpu.memory_space<vmem>>, vector<1x512x128xf32>
      %26 = vector.shape_cast %25 : vector<1x512x128xf32> to vector<512x128xf32>
      %27 = vector.shape_cast %24 : vector<512x128xf32> to vector<1x512x128xf32>
      tpu.vector_store %arg8[%c0_21, %c0_22, %c0_23], %27 {strides = array<i32>} : memref<1x512x128xf32, #tpu.memory_space<vmem>>, vector<1x512x128xf32>,
    } else {
    }
    return
  }
  func.func @transform_0(%arg0: i32, %arg1: i32, %arg2: i32, %arg3: i32) -> (i32, i32, i32) {
    %c0_i32 = arith.constant 0 : i32
    return %arg0, %arg1, %arg3 : i32, i32, i32
  }
  func.func @transform_1(%arg0: i32, %arg1: i32, %arg2: i32, %arg3: i32) -> (i32, i32, i32) {
    %c0_i32 = arith.constant 0 : i32
    return %arg0, %arg3, %arg2 : i32, i32, i32
  }
  func.func @transform_2(%arg0: i32, %arg1: i32, %arg2: i32, %arg3: i32) -> (i32, i32, i32) {
    %c0_i32 = arith.constant 0 : i32
    %c0_i32_0 = arith.constant 0 : i32
    return %arg0, %c0_i32, %arg2 : i32, i32, i32
  }
  func.func @transform_3(%arg0: i32, %arg1: i32, %arg2: i32, %arg3: i32) -> (i32, i32, i32) {
    %c0_i32 = arith.constant 0 : i32
    %c0_i32_0 = arith.constant 0 : i32
    return %arg0, %c0_i32, %arg2 : i32, i32, i32
  }
  func.func @transform_4(%arg0: i32, %arg1: i32, %arg2: i32, %arg3: i32) -> (i32, i32, i32) {
    %c0_i32 = arith.constant 0 : i32
    return %arg0, %arg1, %arg2 : i32, i32, i32
  }
}

</mosaic_0001>

<llo_original>
// kernel: tpu_custom_call.1
$region0: #{tpu_custom_call.1}
  #allocation0 [shape = 'u32[]', space=smem, size = 0x4, offset = 0x4, fixed_abs, tag = 'smem constant byte address 0x4 - core index']
  #allocation1 [shape = 'u32[144,128]{1,0:T(1,128)}', space=vmem, size = 0x12000, scoped, tag = 'internal scratch']
  #allocation2 [shape = 'f32[512,128]{1,0:T(8,128)}', space=vmem, size = 0x40000, scoped, tag = 'scratch operand']
  %s0 = inlined_call_operand.vmem [shape: bf16[1,512,36], index: 0, kind: input, shape index: {}]
  %s1 = inlined_call_operand.vmem [shape: bf16[1,36,128], index: 1, kind: input, shape index: {}]
  %s2 = inlined_call_operand.vmem [shape: f32[1,1,128], index: 2, kind: input, shape index: {}]
  %s3 = inlined_call_operand.vmem [shape: f32[1,1,128], index: 3, kind: input, shape index: {}]
  %s4 = inlined_call_operand.hbm [shape: f32[1,512,128], index: 4, kind: output, shape index: {}]
  %s5 = sld [smem:[#allocation0]]
  $region34: #{tpu_custom_call.1} parent=0
    _
  %s7 = ssub.s32 1, %s5
  %s8 = scalar_select 0, %s7, %s5
  $region1: #{tpu_custom_call.1} parent=0
    #allocation3 [shape = 'u8[262144]{0}', space=vmem, size = 0x40000, scoped, tag = 'output window, operand 0, single buffered']
    #allocation4 [shape = 's32[1]{0}', space=sflag, size = 0x4, scoped, tag = 'scoped memory for tpu_custom_call.1']
    %9 = vsyncpa [#allocation4], 0
    // Predicated region
    $region2: #{tpu_custom_call.1} parent=1 // pred_check
      _
    $region3: #{tpu_custom_call.1} parent=1 // pred_check_branch
      %11 = sbr.rel (0) target = $region5
    $region4: #{tpu_custom_call.1} parent=1 // pred_region
      _
    $region5: #{tpu_custom_call.1} parent=1 // pred_fallthru
      _
    // Predicated region
    $region6: #{tpu_custom_call.1} parent=1 // pred_check
      _
    $region7: #{tpu_custom_call.1} parent=1 // pred_check_branch
      %13 = sbr.rel (0) target = $region9
    $region8: #{tpu_custom_call.1} parent=1 // pred_region
      _
    $region9: #{tpu_custom_call.1} parent=1 // pred_fallthru
      _
    // Predicated region
    $region10: #{tpu_custom_call.1} parent=1 // pred_check
      _
    $region11: #{tpu_custom_call.1} parent=1 // pred_check_branch
      %15 = sbr.rel (0) target = $region13
    $region12: #{tpu_custom_call.1} parent=1 // pred_region
      _
    $region13: #{tpu_custom_call.1} parent=1 // pred_fallthru
      _
    // Predicated region
    $region14: #{tpu_custom_call.1} parent=1 // pred_check
      _
    $region15: #{tpu_custom_call.1} parent=1 // pred_check_branch
      %17 = sbr.rel (0) target = $region17
    $region16: #{tpu_custom_call.1} parent=1 // pred_region
      _
    $region17: #{tpu_custom_call.1} parent=1 // pred_fallthru
      _
    %p19 = scmp.eq.s32.totalorder 0, 0
    // Predicated region
    $region18: #{tpu_custom_call.1} parent=1 // pred_check
      %p20 = pneg %p19
    $region19: #{tpu_custom_call.1} parent=1 // pred_check_branch
      %22 = sbr.rel (%p20) target = $region21
    $region20: #{tpu_custom_call.1} parent=1 // pred_region
      %23 = vst [vmem:[#allocation2] sm:$0xff] 0.0
      %24 = vst [vmem:[#allocation2 + $0x8] sm:$0xff] 0.0
      %25 = vst [vmem:[#allocation2 + $0x10] sm:$0xff] 0.0
      %26 = vst [vmem:[#allocation2 + $0x18] sm:$0xff] 0.0
      %27 = vst [vmem:[#allocation2 + $0x20] sm:$0xff] 0.0
      %28 = vst [vmem:[#allocation2 + $0x28] sm:$0xff] 0.0
      %29 = vst [vmem:[#allocation2 + $0x30] sm:$0xff] 0.0
      %30 = vst [vmem:[#allocation2 + $0x38] sm:$0xff] 0.0
      %31 = vst [vmem:[#allocation2 + $0x40] sm:$0xff] 0.0
      %32 = vst [vmem:[#allocation2 + $0x48] sm:$0xff] 0.0
      %33 = vst [vmem:[#allocation2 + $0x50] sm:$0xff] 0.0
      %34 = vst [vmem:[#allocation2 + $0x58] sm:$0xff] 0.0
      %35 = vst [vmem:[#allocation2 + $0x60] sm:$0xff] 0.0
      %36 = vst [vmem:[#allocation2 + $0x68] sm:$0xff] 0.0
      %37 = vst [vmem:[#allocation2 + $0x70] sm:$0xff] 0.0
      %38 = vst [vmem:[#allocation2 + $0x78] sm:$0xff] 0.0
      %39 = vst [vmem:[#allocation2 + $0x80] sm:$0xff] 0.0
      %40 = vst [vmem:[#allocation2 + $0x88] sm:$0xff] 0.0
      %41 = vst [vmem:[#allocation2 + $0x90] sm:$0xff] 0.0
      %42 = vst [vmem:[#allocation2 + $0x98] sm:$0xff] 0.0
      %43 = vst [vmem:[#allocation2 + $0xa0] sm:$0xff] 0.0
      %44 = vst [vmem:[#allocation2 + $0xa8] sm:$0xff] 0.0
      %45 = vst [vmem:[#allocation2 + $0xb0] sm:$0xff] 0.0
      %46 = vst [vmem:[#allocation2 + $0xb8] sm:$0xff] 0.0
      %47 = vst [vmem:[#allocation2 + $0xc0] sm:$0xff] 0.0
      %48 = vst [vmem:[#allocation2 + $0xc8] sm:$0xff] 0.0
      %49 = vst [vmem:[#allocation2 + $0xd0] sm:$0xff] 0.0
      %50 = vst [vmem:[#allocation2 + $0xd8] sm:$0xff] 0.0
      %51 = vst [vmem:[#allocation2 + $0xe0] sm:$0xff] 0.0
      %52 = vst [vmem:[#allocation2 + $0xe8] sm:$0xff] 0.0
      %53 = vst [vmem:[#allocation2 + $0xf0] sm:$0xff] 0.0
      %54 = vst [vmem:[#allocation2 + $0xf8] sm:$0xff] 0.0
      %55 = vst [vmem:[#allocation2 + $0x100] sm:$0xff] 0.0
      %56 = vst [vmem:[#allocation2 + $0x108] sm:$0xff] 0.0
      %57 = vst [vmem:[#allocation2 + $0x110] sm:$0xff] 0.0
      %58 = vst [vmem:[#allocation2 + $0x118] sm:$0xff] 0.0
      %59 = vst [vmem:[#allocation2 + $0x120] sm:$0xff] 0.0
      %60 = vst [vmem:[#allocation2 + $0x128] sm:$0xff] 0.0
      %61 = vst [vmem:[#allocation2 + $0x130] sm:$0xff] 0.0
      %62 = vst [vmem:[#allocation2 + $0x138] sm:$0xff] 0.0
      %63 = vst [vmem:[#allocation2 + $0x140] sm:$0xff] 0.0
      %64 = vst [vmem:[#allocation2 + $0x148] sm:$0xff] 0.0
      %65 = vst [vmem:[#allocation2 + $0x150] sm:$0xff] 0.0
      %66 = vst [vmem:[#allocation2 + $0x158] sm:$0xff] 0.0
      %67 = vst [vmem:[#allocation2 + $0x160] sm:$0xff] 0.0
      %68 = vst [vmem:[#allocation2 + $0x168] sm:$0xff] 0.0
      %69 = vst [vmem:[#allocation2 + $0x170] sm:$0xff] 0.0
      %70 = vst [vmem:[#allocation2 + $0x178] sm:$0xff] 0.0
      %71 = vst [vmem:[#allocation2 + $0x180] sm:$0xff] 0.0
      %72 = vst [vmem:[#allocation2 + $0x188] sm:$0xff] 0.0
      %73 = vst [vmem:[#allocation2 + $0x190] sm:$0xff] 0.0
      %74 = vst [vmem:[#allocation2 + $0x198] sm:$0xff] 0.0
      %75 = vst [vmem:[#allocation2 + $0x1a0] sm:$0xff] 0.0
      %76 = vst [vmem:[#allocation2 + $0x1a8] sm:$0xff] 0.0
      %77 = vst [vmem:[#allocation2 + $0x1b0] sm:$0xff] 0.0
      %78 = vst [vmem:[#allocation2 + $0x1b8] sm:$0xff] 0.0
      %79 = vst [vmem:[#allocation2 + $0x1c0] sm:$0xff] 0.0
      %80 = vst [vmem:[#allocation2 + $0x1c8] sm:$0xff] 0.0
      %81 = vst [vmem:[#allocation2 + $0x1d0] sm:$0xff] 0.0
      %82 = vst [vmem:[#allocation2 + $0x1d8] sm:$0xff] 0.0
      %83 = vst [vmem:[#allocation2 + $0x1e0] sm:$0xff] 0.0
      %84 = vst [vmem:[#allocation2 + $0x1e8] sm:$0xff] 0.0
      %85 = vst [vmem:[#allocation2 + $0x1f0] sm:$0xff] 0.0
      %86 = vst [vmem:[#allocation2 + $0x1f8] sm:$0xff] 0.0
    $region21: #{tpu_custom_call.1} parent=1 // pred_fallthru
      _
    %v87 = vld [vmem:[#allocation2] sm:$0xff]
    %v88 = vld [vmem:[#allocation2 + $0x8] sm:$0xff]
    %v89 = vld [vmem:[#allocation2 + $0x10] sm:$0xff]
    %v90 = vld [vmem:[#allocation2 + $0x18] sm:$0xff]
    %v91 = vld [vmem:[#allocation2 + $0x20] sm:$0xff]
    %v92 = vld [vmem:[#allocation2 + $0x28] sm:$0xff]
    %v93 = vld [vmem:[#allocation2 + $0x30] sm:$0xff]
    %v94 = vld [vmem:[#allocation2 + $0x38] sm:$0xff]
    %v95 = vld [vmem:[#allocation2 + $0x40] sm:$0xff]
    %v96 = vld [vmem:[#allocation2 + $0x48] sm:$0xff]
    %v97 = vld [vmem:[#allocation2 + $0x50] sm:$0xff]
    %v98 = vld [vmem:[#allocation2 + $0x58] sm:$0xff]
    %v99 = vld [vmem:[#allocation2 + $0x60] sm:$0xff]
    %v100 = vld [vmem:[#allocation2 + $0x68] sm:$0xff]
    %v101 = vld [vmem:[#allocation2 + $0x70] sm:$0xff]
    %v102 = vld [vmem:[#allocation2 + $0x78] sm:$0xff]
    %v103 = vld [vmem:[#allocation2 + $0x80] sm:$0xff]
    %v104 = vld [vmem:[#allocation2 + $0x88] sm:$0xff]
    %v105 = vld [vmem:[#allocation2 + $0x90] sm:$0xff]
    %v106 = vld [vmem:[#allocation2 + $0x98] sm:$0xff]
    %v107 = vld [vmem:[#allocation2 + $0xa0] sm:$0xff]
    %v108 = vld [vmem:[#allocation2 + $0xa8] sm:$0xff]
    %v109 = vld [vmem:[#allocation2 + $0xb0] sm:$0xff]
    %v110 = vld [vmem:[#allocation2 + $0xb8] sm:$0xff]
    %v111 = vld [vmem:[#allocation2 + $0xc0] sm:$0xff]
    %v112 = vld [vmem:[#allocation2 + $0xc8] sm:$0xff]
    %v113 = vld [vmem:[#allocation2 + $0xd0] sm:$0xff]
    %v114 = vld [vmem:[#allocation2 + $0xd8] sm:$0xff]
    %v115 = vld [vmem:[#allocation2 + $0xe0] sm:$0xff]
    %v116 = vld [vmem:[#allocation2 + $0xe8] sm:$0xff]
    %v117 = vld [vmem:[#allocation2 + $0xf0] sm:$0xff]
    %v118 = vld [vmem:[#allocation2 + $0xf8] sm:$0xff]
    %v119 = vld [vmem:[#allocation2 + $0x100] sm:$0xff]
    %v120 = vld [vmem:[#allocation2 + $0x108] sm:$0xff]
    %v121 = vld [vmem:[#allocation2 + $0x110] sm:$0xff]
    %v122 = vld [vmem:[#allocation2 + $0x118] sm:$0xff]
    %v123 = vld [vmem:[#allocation2 + $0x120] sm:$0xff]
    %v124 = vld [vmem:[#allocation2 + $0x128] sm:$0xff]
    %v125 = vld [vmem:[#allocation2 + $0x130] sm:$0xff]
    %v126 = vld [vmem:[#allocation2 + $0x138] sm:$0xff]
    %v127 = vld [vmem:[#allocation2 + $0x140] sm:$0xff]
    %v128 = vld [vmem:[#allocation2 + $0x148] sm:$0xff]
    %v129 = vld [vmem:[#allocation2 + $0x150] sm:$0xff]
    %v130 = vld [vmem:[#allocation2 + $0x158] sm:$0xff]
    %v131 = vld [vmem:[#allocation2 + $0x160] sm:$0xff]
    %v132 = vld [vmem:[#allocation2 + $0x168] sm:$0xff]
    %v133 = vld [vmem:[#allocation2 + $0x170] sm:$0xff]
    %v134 = vld [vmem:[#allocation2 + $0x178] sm:$0xff]
    %v135 = vld [vmem:[#allocation2 + $0x180] sm:$0xff]
    %v136 = vld [vmem:[#allocation2 + $0x188] sm:$0xff]
    %v137 = vld [vmem:[#allocation2 + $0x190] sm:$0xff]
    %v138 = vld [vmem:[#allocation2 + $0x198] sm:$0xff]
    %v139 = vld [vmem:[#allocation2 + $0x1a0] sm:$0xff]
    %v140 = vld [vmem:[#allocation2 + $0x1a8] sm:$0xff]
    %v141 = vld [vmem:[#allocation2 + $0x1b0] sm:$0xff]
    %v142 = vld [vmem:[#allocation2 + $0x1b8] sm:$0xff]
    %v143 = vld [vmem:[#allocation2 + $0x1c0] sm:$0xff]
    %v144 = vld [vmem:[#allocation2 + $0x1c8] sm:$0xff]
    %v145 = vld [vmem:[#allocation2 + $0x1d0] sm:$0xff]
    %v146 = vld [vmem:[#allocation2 + $0x1d8] sm:$0xff]
    %v147 = vld [vmem:[#allocation2 + $0x1e0] sm:$0xff]
    %v148 = vld [vmem:[#allocation2 + $0x1e8] sm:$0xff]
    %v149 = vld [vmem:[#allocation2 + $0x1f0] sm:$0xff]
    %v150 = vld [vmem:[#allocation2 + $0x1f8] sm:$0xff]
    %v151 = vld [vmem:[%s0] sm:$0xf]
    %v152 = vld [vmem:[%s0 + $0x4] sm:$0xf]
    %v153 = vld [vmem:[%s0 + $0x8] sm:$0xf]
    %v154 = vld [vmem:[%s0 + $0xc] sm:$0xf]
    %v155 = vld [vmem:[%s0 + $0x10] sm:$0xf]
    %v156 = vld [vmem:[%s0 + $0x14] sm:$0xf]
    %v157 = vld [vmem:[%s0 + $0x18] sm:$0xf]
    %v158 = vld [vmem:[%s0 + $0x1c] sm:$0xf]
    %v159 = vld [vmem:[%s0 + $0x20] sm:$0xf]
    %v160 = vld [vmem:[%s0 + $0x24] sm:$0xf]
    %v161 = vld [vmem:[%s0 + $0x28] sm:$0xf]
    %v162 = vld [vmem:[%s0 + $0x2c] sm:$0xf]
    %v163 = vld [vmem:[%s0 + $0x30] sm:$0xf]
    %v164 = vld [vmem:[%s0 + $0x34] sm:$0xf]
    %v165 = vld [vmem:[%s0 + $0x38] sm:$0xf]
    %v166 = vld [vmem:[%s0 + $0x3c] sm:$0xf]
    %v167 = vld [vmem:[%s0 + $0x40] sm:$0xf]
    %v168 = vld [vmem:[%s0 + $0x44] sm:$0xf]
    %v169 = vld [vmem:[%s0 + $0x48] sm:$0xf]
    %v170 = vld [vmem:[%s0 + $0x4c] sm:$0xf]
    %v171 = vld [vmem:[%s0 + $0x50] sm:$0xf]
    %v172 = vld [vmem:[%s0 + $0x54] sm:$0xf]
    %v173 = vld [vmem:[%s0 + $0x58] sm:$0xf]
    %v174 = vld [vmem:[%s0 + $0x5c] sm:$0xf]
    %v175 = vld [vmem:[%s0 + $0x60] sm:$0xf]
    %v176 = vld [vmem:[%s0 + $0x64] sm:$0xf]
    %v177 = vld [vmem:[%s0 + $0x68] sm:$0xf]
    %v178 = vld [vmem:[%s0 + $0x6c] sm:$0xf]
    %v179 = vld [vmem:[%s0 + $0x70] sm:$0xf]
    %v180 = vld [vmem:[%s0 + $0x74] sm:$0xf]
    %v181 = vld [vmem:[%s0 + $0x78] sm:$0xf]
    %v182 = vld [vmem:[%s0 + $0x7c] sm:$0xf]
    %v183 = vld [vmem:[%s0 + $0x80] sm:$0xf]
    %v184 = vld [vmem:[%s0 + $0x84] sm:$0xf]
    %v185 = vld [vmem:[%s0 + $0x88] sm:$0xf]
    %v186 = vld [vmem:[%s0 + $0x8c] sm:$0xf]
    %v187 = vld [vmem:[%s0 + $0x90] sm:$0xf]
    %v188 = vld [vmem:[%s0 + $0x94] sm:$0xf]
    %v189 = vld [vmem:[%s0 + $0x98] sm:$0xf]
    %v190 = vld [vmem:[%s0 + $0x9c] sm:$0xf]
    %v191 = vld [vmem:[%s0 + $0xa0] sm:$0xf]
    %v192 = vld [vmem:[%s0 + $0xa4] sm:$0xf]
    %v193 = vld [vmem:[%s0 + $0xa8] sm:$0xf]
    %v194 = vld [vmem:[%s0 + $0xac] sm:$0xf]
    %v195 = vld [vmem:[%s0 + $0xb0] sm:$0xf]
    %v196 = vld [vmem:[%s0 + $0xb4] sm:$0xf]
    %v197 = vld [vmem:[%s0 + $0xb8] sm:$0xf]
    %v198 = vld [vmem:[%s0 + $0xbc] sm:$0xf]
    %v199 = vld [vmem:[%s0 + $0xc0] sm:$0xf]
    %v200 = vld [vmem:[%s0 + $0xc4] sm:$0xf]
    %v201 = vld [vmem:[%s0 + $0xc8] sm:$0xf]
    %v202 = vld [vmem:[%s0 + $0xcc] sm:$0xf]
    %v203 = vld [vmem:[%s0 + $0xd0] sm:$0xf]
    %v204 = vld [vmem:[%s0 + $0xd4] sm:$0xf]
    %v205 = vld [vmem:[%s0 + $0xd8] sm:$0xf]
    %v206 = vld [vmem:[%s0 + $0xdc] sm:$0xf]
    %v207 = vld [vmem:[%s0 + $0xe0] sm:$0xf]
    %v208 = vld [vmem:[%s0 + $0xe4] sm:$0xf]
    %v209 = vld [vmem:[%s0 + $0xe8] sm:$0xf]
    %v210 = vld [vmem:[%s0 + $0xec] sm:$0xf]
    %v211 = vld [vmem:[%s0 + $0xf0] sm:$0xf]
    %v212 = vld [vmem:[%s0 + $0xf4] sm:$0xf]
    %v213 = vld [vmem:[%s0 + $0xf8] sm:$0xf]
    %v214 = vld [vmem:[%s0 + $0xfc] sm:$0xf]
    %v215 = vld [vmem:[%s1] sm:$0xf]
    %v216 = vld [vmem:[%s1 + $0x4] sm:$0xf]
    %v217 = vld [vmem:[%s1 + $0x8] sm:$0xf]
    %v218 = vld [vmem:[%s1 + $0xc] sm:$0xf]
    %v219 = vld [vmem:[%s1 + $0x10] sm:$0x3]
    %v284 = vunpack.c.l.b16 %v151
    %v285 = vunpack.c.l.b16 %v152
    %v286 = vunpack.c.l.b16 %v153
    %v287 = vunpack.c.l.b16 %v154
    %v288 = vunpack.c.l.b16 %v155
    %v289 = vunpack.c.l.b16 %v156
    %v290 = vunpack.c.l.b16 %v157
    %v291 = vunpack.c.l.b16 %v158
    %v292 = vunpack.c.l.b16 %v159
    %v293 = vunpack.c.l.b16 %v160
    %v294 = vunpack.c.l.b16 %v161
    %v295 = vunpack.c.l.b16 %v162
    %v296 = vunpack.c.l.b16 %v163
    %v297 = vunpack.c.l.b16 %v164
    %v298 = vunpack.c.l.b16 %v165
    %v299 = vunpack.c.l.b16 %v166
    %v300 = vunpack.c.l.b16 %v167
    %v301 = vunpack.c.l.b16 %v168
    %v302 = vunpack.c.l.b16 %v169
    %v303 = vunpack.c.l.b16 %v170
    %v304 = vunpack.c.l.b16 %v171
    %v305 = vunpack.c.l.b16 %v172
    %v306 = vunpack.c.l.b16 %v173
    %v307 = vunpack.c.l.b16 %v174
    %v308 = vunpack.c.l.b16 %v175
    %v309 = vunpack.c.l.b16 %v176
    %v310 = vunpack.c.l.b16 %v177
    %v311 = vunpack.c.l.b16 %v178
    %v312 = vunpack.c.l.b16 %v179
    %v313 = vunpack.c.l.b16 %v180
    %v314 = vunpack.c.l.b16 %v181
    %v315 = vunpack.c.l.b16 %v182
    %v316 = vunpack.c.l.b16 %v183
    %v317 = vunpack.c.l.b16 %v184
    %v318 = vunpack.c.l.b16 %v185
    %v319 = vunpack.c.l.b16 %v186
    %v320 = vunpack.c.l.b16 %v187
    %v321 = vunpack.c.l.b16 %v188
    %v322 = vunpack.c.l.b16 %v189
    %v323 = vunpack.c.l.b16 %v190
    %v324 = vunpack.c.l.b16 %v191
    %v325 = vunpack.c.l.b16 %v192
    %v326 = vunpack.c.l.b16 %v193
    %v327 = vunpack.c.l.b16 %v194
    %v328 = vunpack.c.l.b16 %v195
    %v329 = vunpack.c.l.b16 %v196
    %v330 = vunpack.c.l.b16 %v197
    %v331 = vunpack.c.l.b16 %v198
    %v332 = vunpack.c.l.b16 %v199
    %v333 = vunpack.c.l.b16 %v200
    %v334 = vunpack.c.l.b16 %v201
    %v335 = vunpack.c.l.b16 %v202
    %v336 = vunpack.c.l.b16 %v203
    %v337 = vunpack.c.l.b16 %v204
    %v338 = vunpack.c.l.b16 %v205
    %v339 = vunpack.c.l.b16 %v206
    %v340 = vunpack.c.l.b16 %v207
    %v341 = vunpack.c.l.b16 %v208
    %v342 = vunpack.c.l.b16 %v209
    %v343 = vunpack.c.l.b16 %v210
    %v344 = vunpack.c.l.b16 %v211
    %v345 = vunpack.c.l.b16 %v212
    %v346 = vunpack.c.l.b16 %v213
    %v347 = vunpack.c.l.b16 %v214
    %v348 = vpack.c.b16 %v285, %v284
    %v349 = vpack.c.b16 %v287, %v286
    %v350 = vpack.c.b16 %v289, %v288
    %v351 = vpack.c.b16 %v291, %v290
    %v352 = vpack.c.b16 %v293, %v292
    %v353 = vpack.c.b16 %v295, %v294
    %v354 = vpack.c.b16 %v297, %v296
    %v355 = vpack.c.b16 %v299, %v298
    %v356 = vpack.c.b16 %v301, %v300
    %v357 = vpack.c.b16 %v303, %v302
    %v358 = vpack.c.b16 %v305, %v304
    %v359 = vpack.c.b16 %v307, %v306
    %v360 = vpack.c.b16 %v309, %v308
    %v361 = vpack.c.b16 %v311, %v310
    %v362 = vpack.c.b16 %v313, %v312
    %v363 = vpack.c.b16 %v315, %v314
    %v364 = vpack.c.b16 %v317, %v316
    %v365 = vpack.c.b16 %v319, %v318
    %v366 = vpack.c.b16 %v321, %v320
    %v367 = vpack.c.b16 %v323, %v322
    %v368 = vpack.c.b16 %v325, %v324
    %v369 = vpack.c.b16 %v327, %v326
    %v370 = vpack.c.b16 %v329, %v328
    %v371 = vpack.c.b16 %v331, %v330
    %v372 = vpack.c.b16 %v333, %v332
    %v373 = vpack.c.b16 %v335, %v334
    %v374 = vpack.c.b16 %v337, %v336
    %v375 = vpack.c.b16 %v339, %v338
    %v376 = vpack.c.b16 %v341, %v340
    %v377 = vpack.c.b16 %v343, %v342
    %v378 = vpack.c.b16 %v345, %v344
    %v379 = vpack.c.b16 %v347, %v346
    %v385 = vunpack.c.l.b16 %v215
    %v386 = vunpack.c.l.b16 %v216
    %v387 = vunpack.c.l.b16 %v217
    %v388 = vunpack.c.l.b16 %v218
    %v389 = vunpack.c.l.b16 %v219
    %v390 = vpack.c.b16 %v386, %v385
    %v391 = vpack.c.b16 %v388, %v387
    %v392 = vpack.c.b16 %v389, %v389
    %vm395 = vcmask 293888
    %v397 = vsel %vm395, %v348, 0
    %v400 = vsel %vm395, %v349, 0
    %v403 = vsel %vm395, %v350, 0
    %v406 = vsel %vm395, %v351, 0
    %v409 = vsel %vm395, %v352, 0
    %v412 = vsel %vm395, %v353, 0
    %v415 = vsel %vm395, %v354, 0
    %v418 = vsel %vm395, %v355, 0
    %v421 = vsel %vm395, %v356, 0
    %v424 = vsel %vm395, %v357, 0
    %v427 = vsel %vm395, %v358, 0
    %v430 = vsel %vm395, %v359, 0
    %v433 = vsel %vm395, %v360, 0
    %v436 = vsel %vm395, %v361, 0
    %v439 = vsel %vm395, %v362, 0
    %v442 = vsel %vm395, %v363, 0
    %v445 = vsel %vm395, %v364, 0
    %v448 = vsel %vm395, %v365, 0
    %v451 = vsel %vm395, %v366, 0
    %v454 = vsel %vm395, %v367, 0
    %v457 = vsel %vm395, %v368, 0
    %v460 = vsel %vm395, %v369, 0
    %v463 = vsel %vm395, %v370, 0
    %v466 = vsel %vm395, %v371, 0
    %v469 = vsel %vm395, %v372, 0
    %v472 = vsel %vm395, %v373, 0
    %v475 = vsel %vm395, %v374, 0
    %v478 = vsel %vm395, %v375, 0
    %v481 = vsel %vm395, %v376, 0
    %v484 = vsel %vm395, %v377, 0
    %v487 = vsel %vm395, %v378, 0
    %v490 = vsel %vm395, %v379, 0
    %vm492 = vcmask 1041408
    %v494 = vsel %vm492, %v392, 0
    %496 = vmatprep.subr.bf16.mxu0 0
    %497 = vmatpush1.bf16.msra.mxu0 %v390
    %498 = vmatprep.subr.bf16.mxu0 0
    %499 = vmatpush1.bf16.msra.mxu0 %v391
    %500 = vmatprep.subr.bf16.mxu0 0
    %501 = vmatpush1.bf16.msra.mxu0 %v494
    %502 = vmatprep.subr.bf16.mxu0 0
    %503 = vmatpush1.bf16.msra.mxu0 0
    %504 = vmatprep.subr.bf16.mxu0 0
    %505 = vmatpush1.bf16.msra.mxu0 0
    %506 = vmatprep.subr.bf16.mxu0 0
    %507 = vmatpush1.bf16.msra.mxu0 0
    %508 = vmatprep.subr.bf16.mxu0 0
    %509 = vmatpush1.bf16.msra.mxu0 0
    %510 = vmatprep.subr.bf16.mxu0 0
    %511 = vmatpush1.bf16.msra.mxu0 0
    %512 = vmatprep.subr.bf16.mxu0 0
    %513 = vmatpush1.bf16.msra.mxu0 0
    %514 = vmatprep.subr.bf16.mxu0 0
    %515 = vmatpush1.bf16.msra.mxu0 0
    %516 = vmatprep.subr.bf16.mxu0 0
    %517 = vmatpush1.bf16.msra.mxu0 0
    %518 = vmatprep.subr.bf16.mxu0 0
    %519 = vmatpush1.bf16.msra.mxu0 0
    %520 = vmatprep.subr.bf16.mxu0 0
    %521 = vmatpush1.bf16.msra.mxu0 0
    %522 = vmatprep.subr.bf16.mxu0 0
    %523 = vmatpush1.bf16.msra.mxu0 0
    %524 = vmatprep.subr.bf16.mxu0 0
    %525 = vmatpush1.bf16.msra.mxu0 0
    %526 = vmatprep.subr.bf16.mxu0 0
    %527 = vmatpush1.bf16.msra.mxu0 0
    %528 = vmatprep.mubr.bf16.mxu0 0
    %529 = vmatmul.mubr.bf16.gmra.mrb[0].mxu0 %v397
    %v530 = vpop.f32.mrb[0].mxu0
    %v531 = vadd.f32 0.0, %v530
    %v532 = vpop.f32.mrb[0].mxu0
    %v533 = vpop.f32.mrb[0].mxu0
    %v534 = vadd.f32 0.0, %v533
    %v535 = vpop.f32.mrb[0].mxu0
    %536 = vmatprep.mubr.bf16.mxu0 0
    %537 = vmatmul.mubr.bf16.gmra.mrb[0].mxu0 %v400
    %v538 = vpop.f32.mrb[0].mxu0
    %v539 = vadd.f32 0.0, %v538
    %v540 = vpop.f32.mrb[0].mxu0
    %v541 = vpop.f32.mrb[0].mxu0
    %v542 = vadd.f32 0.0, %v541
    %v543 = vpop.f32.mrb[0].mxu0
    %544 = vmatprep.mubr.bf16.mxu0 0
    %545 = vmatmul.mubr.bf16.gmra.mrb[0].mxu0 %v403
    %v546 = vpop.f32.mrb[0].mxu0
    %v547 = vadd.f32 0.0, %v546
    %v548 = vpop.f32.mrb[0].mxu0
    %v549 = vpop.f32.mrb[0].mxu0
    %v550 = vadd.f32 0.0, %v549
    %v551 = vpop.f32.mrb[0].mxu0
    %552 = vmatprep.mubr.bf16.mxu0 0
    %553 = vmatmul.mubr.bf16.gmra.mrb[0].mxu0 %v406
    %v554 = vpop.f32.mrb[0].mxu0
    %v555 = vadd.f32 0.0, %v554
    %v556 = vpop.f32.mrb[0].mxu0
    %v557 = vpop.f32.mrb[0].mxu0
    %v558 = vadd.f32 0.0, %v557
    %v559 = vpop.f32.mrb[0].mxu0
    %560 = vmatprep.mubr.bf16.mxu0 0
    %561 = vmatmul.mubr.bf16.gmra.mrb[0].mxu0 %v409
    %v562 = vpop.f32.mrb[0].mxu0
    %v563 = vadd.f32 0.0, %v562
    %v564 = vpop.f32.mrb[0].mxu0
    %v565 = vpop.f32.mrb[0].mxu0
    %v566 = vadd.f32 0.0, %v565
    %v567 = vpop.f32.mrb[0].mxu0
    %568 = vmatprep.mubr.bf16.mxu0 0
    %569 = vmatmul.mubr.bf16.gmra.mrb[0].mxu0 %v412
    %v570 = vpop.f32.mrb[0].mxu0
    %v571 = vadd.f32 0.0, %v570
    %v572 = vpop.f32.mrb[0].mxu0
    %v573 = vpop.f32.mrb[0].mxu0
    %v574 = vadd.f32 0.0, %v573
    %v575 = vpop.f32.mrb[0].mxu0
    %576 = vmatprep.mubr.bf16.mxu0 0
    %577 = vmatmul.mubr.bf16.gmra.mrb[0].mxu0 %v415
    %v578 = vpop.f32.mrb[0].mxu0
    %v579 = vadd.f32 0.0, %v578
    %v580 = vpop.f32.mrb[0].mxu0
    %v581 = vpop.f32.mrb[0].mxu0
    %v582 = vadd.f32 0.0, %v581
    %v583 = vpop.f32.mrb[0].mxu0
    %584 = vmatprep.mubr.bf16.mxu0 0
    %585 = vmatmul.mubr.bf16.gmra.mrb[0].mxu0 %v418
    %v586 = vpop.f32.mrb[0].mxu0
    %v587 = vadd.f32 0.0, %v586
    %v588 = vpop.f32.mrb[0].mxu0
    %v589 = vpop.f32.mrb[0].mxu0
    %v590 = vadd.f32 0.0, %v589
    %v591 = vpop.f32.mrb[0].mxu0
    %592 = vmatprep.mubr.bf16.mxu0 0
    %593 = vmatmul.mubr.bf16.gmra.mrb[0].mxu0 %v421
    %v594 = vpop.f32.mrb[0].mxu0
    %v595 = vadd.f32 0.0, %v594
    %v596 = vpop.f32.mrb[0].mxu0
    %v597 = vpop.f32.mrb[0].mxu0
    %v598 = vadd.f32 0.0, %v597
    %v599 = vpop.f32.mrb[0].mxu0
    %600 = vmatprep.mubr.bf16.mxu0 0
    %601 = vmatmul.mubr.bf16.gmra.mrb[0].mxu0 %v424
    %v602 = vpop.f32.mrb[0].mxu0
    %v603 = vadd.f32 0.0, %v602
    %v604 = vpop.f32.mrb[0].mxu0
    %v605 = vpop.f32.mrb[0].mxu0
    %v606 = vadd.f32 0.0, %v605
    %v607 = vpop.f32.mrb[0].mxu0
    %608 = vmatprep.mubr.bf16.mxu0 0
    %609 = vmatmul.mubr.bf16.gmra.mrb[0].mxu0 %v427
    %v610 = vpop.f32.mrb[0].mxu0
    %v611 = vadd.f32 0.0, %v610
    %v612 = vpop.f32.mrb[0].mxu0
    %v613 = vpop.f32.mrb[0].mxu0
    %v614 = vadd.f32 0.0, %v613
    %v615 = vpop.f32.mrb[0].mxu0
    %616 = vmatprep.mubr.bf16.mxu0 0
    %617 = vmatmul.mubr.bf16.gmra.mrb[0].mxu0 %v430
    %v618 = vpop.f32.mrb[0].mxu0
    %v619 = vadd.f32 0.0, %v618
    %v620 = vpop.f32.mrb[0].mxu0
    %v621 = vpop.f32.mrb[0].mxu0
    %v622 = vadd.f32 0.0, %v621
    %v623 = vpop.f32.mrb[0].mxu0
    %624 = vmatprep.mubr.bf16.mxu0 0
    %625 = vmatmul.mubr.bf16.gmra.mrb[0].mxu0 %v433
    %v626 = vpop.f32.mrb[0].mxu0
    %v627 = vadd.f32 0.0, %v626
    %v628 = vpop.f32.mrb[0].mxu0
    %v629 = vpop.f32.mrb[0].mxu0
    %v630 = vadd.f32 0.0, %v629
    %v631 = vpop.f32.mrb[0].mxu0
    %632 = vmatprep.mubr.bf16.mxu0 0
    %633 = vmatmul.mubr.bf16.gmra.mrb[0].mxu0 %v436
    %v634 = vpop.f32.mrb[0].mxu0
    %v635 = vadd.f32 0.0, %v634
    %v636 = vpop.f32.mrb[0].mxu0
    %v637 = vpop.f32.mrb[0].mxu0
    %v638 = vadd.f32 0.0, %v637
    %v639 = vpop.f32.mrb[0].mxu0
    %640 = vmatprep.mubr.bf16.mxu0 0
    %641 = vmatmul.mubr.bf16.gmra.mrb[0].mxu0 %v439
    %v642 = vpop.f32.mrb[0].mxu0
    %v643 = vadd.f32 0.0, %v642
    %v644 = vpop.f32.mrb[0].mxu0
    %v645 = vpop.f32.mrb[0].mxu0
    %v646 = vadd.f32 0.0, %v645
    %v647 = vpop.f32.mrb[0].mxu0
    %648 = vmatprep.mubr.bf16.mxu0 0
    %649 = vmatmul.mubr.bf16.gmra.mrb[0].mxu0 %v442
    %v650 = vpop.f32.mrb[0].mxu0
    %v651 = vadd.f32 0.0, %v650
    %v652 = vpop.f32.mrb[0].mxu0
    %v653 = vpop.f32.mrb[0].mxu0
    %v654 = vadd.f32 0.0, %v653
    %v655 = vpop.f32.mrb[0].mxu0
    %656 = vmatprep.mubr.bf16.mxu0 0
    %657 = vmatmul.mubr.bf16.gmra.mrb[0].mxu0 %v445
    %v658 = vpop.f32.mrb[0].mxu0
    %v659 = vadd.f32 0.0, %v658
    %v660 = vpop.f32.mrb[0].mxu0
    %v661 = vpop.f32.mrb[0].mxu0
    %v662 = vadd.f32 0.0, %v661
    %v663 = vpop.f32.mrb[0].mxu0
    %664 = vmatprep.mubr.bf16.mxu0 0
    %665 = vmatmul.mubr.bf16.gmra.mrb[0].mxu0 %v448
    %v666 = vpop.f32.mrb[0].mxu0
    %v667 = vadd.f32 0.0, %v666
    %v668 = vpop.f32.mrb[0].mxu0
    %v669 = vpop.f32.mrb[0].mxu0
    %v670 = vadd.f32 0.0, %v669
    %v671 = vpop.f32.mrb[0].mxu0
    %672 = vmatprep.mubr.bf16.mxu0 0
    %673 = vmatmul.mubr.bf16.gmra.mrb[0].mxu0 %v451
    %v674 = vpop.f32.mrb[0].mxu0
    %v675 = vadd.f32 0.0, %v674
    %v676 = vpop.f32.mrb[0].mxu0
    %v677 = vpop.f32.mrb[0].mxu0
    %v678 = vadd.f32 0.0, %v677
    %v679 = vpop.f32.mrb[0].mxu0
    %680 = vmatprep.mubr.bf16.mxu0 0
    %681 = vmatmul.mubr.bf16.gmra.mrb[0].mxu0 %v454
    %v682 = vpop.f32.mrb[0].mxu0
    %v683 = vadd.f32 0.0, %v682
    %v684 = vpop.f32.mrb[0].mxu0
    %v685 = vpop.f32.mrb[0].mxu0
    %v686 = vadd.f32 0.0, %v685
    %v687 = vpop.f32.mrb[0].mxu0
    %688 = vmatprep.mubr.bf16.mxu0 0
    %689 = vmatmul.mubr.bf16.gmra.mrb[0].mxu0 %v457
    %v690 = vpop.f32.mrb[0].mxu0
    %v691 = vadd.f32 0.0, %v690
    %v692 = vpop.f32.mrb[0].mxu0
    %v693 = vpop.f32.mrb[0].mxu0
    %v694 = vadd.f32 0.0, %v693
    %v695 = vpop.f32.mrb[0].mxu0
    %696 = vmatprep.mubr.bf16.mxu0 0
    %697 = vmatmul.mubr.bf16.gmra.mrb[0].mxu0 %v460
    %v698 = vpop.f32.mrb[0].mxu0
    %v699 = vadd.f32 0.0, %v698
    %v700 = vpop.f32.mrb[0].mxu0
    %v701 = vpop.f32.mrb[0].mxu0
    %v702 = vadd.f32 0.0, %v701
    %v703 = vpop.f32.mrb[0].mxu0
    %704 = vmatprep.mubr.bf16.mxu0 0
    %705 = vmatmul.mubr.bf16.gmra.mrb[0].mxu0 %v463
    %v706 = vpop.f32.mrb[0].mxu0
    %v707 = vadd.f32 0.0, %v706
    %v708 = vpop.f32.mrb[0].mxu0
    %v709 = vpop.f32.mrb[0].mxu0
    %v710 = vadd.f32 0.0, %v709
    %v711 = vpop.f32.mrb[0].mxu0
    %712 = vmatprep.mubr.bf16.mxu0 0
    %713 = vmatmul.mubr.bf16.gmra.mrb[0].mxu0 %v466
    %v714 = vpop.f32.mrb[0].mxu0
    %v715 = vadd.f32 0.0, %v714
    %v716 = vpop.f32.mrb[0].mxu0
    %v717 = vpop.f32.mrb[0].mxu0
    %v718 = vadd.f32 0.0, %v717
    %v719 = vpop.f32.mrb[0].mxu0
    %720 = vmatprep.mubr.bf16.mxu0 0
    %721 = vmatmul.mubr.bf16.gmra.mrb[0].mxu0 %v469
    %v722 = vpop.f32.mrb[0].mxu0
    %v723 = vadd.f32 0.0, %v722
    %v724 = vpop.f32.mrb[0].mxu0
    %v725 = vpop.f32.mrb[0].mxu0
    %v726 = vadd.f32 0.0, %v725
    %v727 = vpop.f32.mrb[0].mxu0
    %728 = vmatprep.mubr.bf16.mxu0 0
    %729 = vmatmul.mubr.bf16.gmra.mrb[0].mxu0 %v472
    %v730 = vpop.f32.mrb[0].mxu0
    %v731 = vadd.f32 0.0, %v730
    %v732 = vpop.f32.mrb[0].mxu0
    %v733 = vpop.f32.mrb[0].mxu0
    %v734 = vadd.f32 0.0, %v733
    %v735 = vpop.f32.mrb[0].mxu0
    %736 = vmatprep.mubr.bf16.mxu0 0
    %737 = vmatmul.mubr.bf16.gmra.mrb[0].mxu0 %v475
    %v738 = vpop.f32.mrb[0].mxu0
    %v739 = vadd.f32 0.0, %v738
    %v740 = vpop.f32.mrb[0].mxu0
    %v741 = vpop.f32.mrb[0].mxu0
    %v742 = vadd.f32 0.0, %v741
    %v743 = vpop.f32.mrb[0].mxu0
    %744 = vmatprep.mubr.bf16.mxu0 0
    %745 = vmatmul.mubr.bf16.gmra.mrb[0].mxu0 %v478
    %v746 = vpop.f32.mrb[0].mxu0
    %v747 = vadd.f32 0.0, %v746
    %v748 = vpop.f32.mrb[0].mxu0
    %v749 = vpop.f32.mrb[0].mxu0
    %v750 = vadd.f32 0.0, %v749
    %v751 = vpop.f32.mrb[0].mxu0
    %752 = vmatprep.mubr.bf16.mxu0 0
    %753 = vmatmul.mubr.bf16.gmra.mrb[0].mxu0 %v481
    %v754 = vpop.f32.mrb[0].mxu0
    %v755 = vadd.f32 0.0, %v754
    %v756 = vpop.f32.mrb[0].mxu0
    %v757 = vpop.f32.mrb[0].mxu0
    %v758 = vadd.f32 0.0, %v757
    %v759 = vpop.f32.mrb[0].mxu0
    %760 = vmatprep.mubr.bf16.mxu0 0
    %761 = vmatmul.mubr.bf16.gmra.mrb[0].mxu0 %v484
    %v762 = vpop.f32.mrb[0].mxu0
    %v763 = vadd.f32 0.0, %v762
    %v764 = vpop.f32.mrb[0].mxu0
    %v765 = vpop.f32.mrb[0].mxu0
    %v766 = vadd.f32 0.0, %v765
    %v767 = vpop.f32.mrb[0].mxu0
    %768 = vmatprep.mubr.bf16.mxu0 0
    %769 = vmatmul.mubr.bf16.gmra.mrb[0].mxu0 %v487
    %v770 = vpop.f32.mrb[0].mxu0
    %v771 = vadd.f32 0.0, %v770
    %v772 = vpop.f32.mrb[0].mxu0
    %v773 = vpop.f32.mrb[0].mxu0
    %v774 = vadd.f32 0.0, %v773
    %v775 = vpop.f32.mrb[0].mxu0
    %776 = vmatprep.mubr.bf16.mxu0 0
    %777 = vmatmul.mubr.bf16.gmra.mrb[0].mxu0 %v490
    %v778 = vpop.f32.mrb[0].mxu0
    %v779 = vadd.f32 0.0, %v778
    %v780 = vpop.f32.mrb[0].mxu0
    %v781 = vpop.f32.mrb[0].mxu0
    %v782 = vadd.f32 0.0, %v781
    %v783 = vpop.f32.mrb[0].mxu0
    %784 = vdwg.mxu0
    %v785 = vadd.f32 %v87, %v531
    %v786 = vadd.f32 %v88, %v534
    %v787 = vadd.f32 %v89, %v539
    %v788 = vadd.f32 %v90, %v542
    %v789 = vadd.f32 %v91, %v547
    %v790 = vadd.f32 %v92, %v550
    %v791 = vadd.f32 %v93, %v555
    %v792 = vadd.f32 %v94, %v558
    %v793 = vadd.f32 %v95, %v563
    %v794 = vadd.f32 %v96, %v566
    %v795 = vadd.f32 %v97, %v571
    %v796 = vadd.f32 %v98, %v574
    %v797 = vadd.f32 %v99, %v579
    %v798 = vadd.f32 %v100, %v582
    %v799 = vadd.f32 %v101, %v587
    %v800 = vadd.f32 %v102, %v590
    %v801 = vadd.f32 %v103, %v595
    %v802 = vadd.f32 %v104, %v598
    %v803 = vadd.f32 %v105, %v603
    %v804 = vadd.f32 %v106, %v606
    %v805 = vadd.f32 %v107, %v611
    %v806 = vadd.f32 %v108, %v614
    %v807 = vadd.f32 %v109, %v619
    %v808 = vadd.f32 %v110, %v622
    %v809 = vadd.f32 %v111, %v627
    %v810 = vadd.f32 %v112, %v630
    %v811 = vadd.f32 %v113, %v635
    %v812 = vadd.f32 %v114, %v638
    %v813 = vadd.f32 %v115, %v643
    %v814 = vadd.f32 %v116, %v646
    %v815 = vadd.f32 %v117, %v651
    %v816 = vadd.f32 %v118, %v654
    %v817 = vadd.f32 %v119, %v659
    %v818 = vadd.f32 %v120, %v662
    %v819 = vadd.f32 %v121, %v667
    %v820 = vadd.f32 %v122, %v670
    %v821 = vadd.f32 %v123, %v675
    %v822 = vadd.f32 %v124, %v678
    %v823 = vadd.f32 %v125, %v683
    %v824 = vadd.f32 %v126, %v686
    %v825 = vadd.f32 %v127, %v691
    %v826 = vadd.f32 %v128, %v694
    %v827 = vadd.f32 %v129, %v699
    %v828 = vadd.f32 %v130, %v702
    %v829 = vadd.f32 %v131, %v707
    %v830 = vadd.f32 %v132, %v710
    %v831 = vadd.f32 %v133, %v715
    %v832 = vadd.f32 %v134, %v718
    %v833 = vadd.f32 %v135, %v723
    %v834 = vadd.f32 %v136, %v726
    %v835 = vadd.f32 %v137, %v731
    %v836 = vadd.f32 %v138, %v734
    %v837 = vadd.f32 %v139, %v739
    %v838 = vadd.f32 %v140, %v742
    %v839 = vadd.f32 %v141, %v747
    %v840 = vadd.f32 %v142, %v750
    %v841 = vadd.f32 %v143, %v755
    %v842 = vadd.f32 %v144, %v758
    %v843 = vadd.f32 %v145, %v763
    %v844 = vadd.f32 %v146, %v766
    %v845 = vadd.f32 %v147, %v771
    %v846 = vadd.f32 %v148, %v774
    %v847 = vadd.f32 %v149, %v779
    %v848 = vadd.f32 %v150, %v782
    %849 = vst [vmem:[#allocation2] sm:$0xff] %v785
    %850 = vst [vmem:[#allocation2 + $0x8] sm:$0xff] %v786
    %851 = vst [vmem:[#allocation2 + $0x10] sm:$0xff] %v787
    %852 = vst [vmem:[#allocation2 + $0x18] sm:$0xff] %v788
    %853 = vst [vmem:[#allocation2 + $0x20] sm:$0xff] %v789
    %854 = vst [vmem:[#allocation2 + $0x28] sm:$0xff] %v790
    %855 = vst [vmem:[#allocation2 + $0x30] sm:$0xff] %v791
    %856 = vst [vmem:[#allocation2 + $0x38] sm:$0xff] %v792
    %857 = vst [vmem:[#allocation2 + $0x40] sm:$0xff] %v793
    %858 = vst [vmem:[#allocation2 + $0x48] sm:$0xff] %v794
    %859 = vst [vmem:[#allocation2 + $0x50] sm:$0xff] %v795
    %860 = vst [vmem:[#allocation2 + $0x58] sm:$0xff] %v796
    %861 = vst [vmem:[#allocation2 + $0x60] sm:$0xff] %v797
    %862 = vst [vmem:[#allocation2 + $0x68] sm:$0xff] %v798
    %863 = vst [vmem:[#allocation2 + $0x70] sm:$0xff] %v799
    %864 = vst [vmem:[#allocation2 + $0x78] sm:$0xff] %v800
    %865 = vst [vmem:[#allocation2 + $0x80] sm:$0xff] %v801
    %866 = vst [vmem:[#allocation2 + $0x88] sm:$0xff] %v802
    %867 = vst [vmem:[#allocation2 + $0x90] sm:$0xff] %v803
    %868 = vst [vmem:[#allocation2 + $0x98] sm:$0xff] %v804
    %869 = vst [vmem:[#allocation2 + $0xa0] sm:$0xff] %v805
    %870 = vst [vmem:[#allocation2 + $0xa8] sm:$0xff] %v806
    %871 = vst [vmem:[#allocation2 + $0xb0] sm:$0xff] %v807
    %872 = vst [vmem:[#allocation2 + $0xb8] sm:$0xff] %v808
    %873 = vst [vmem:[#allocation2 + $0xc0] sm:$0xff] %v809
    %874 = vst [vmem:[#allocation2 + $0xc8] sm:$0xff] %v810
    %875 = vst [vmem:[#allocation2 + $0xd0] sm:$0xff] %v811
    %876 = vst [vmem:[#allocation2 + $0xd8] sm:$0xff] %v812
    %877 = vst [vmem:[#allocation2 + $0xe0] sm:$0xff] %v813
    %878 = vst [vmem:[#allocation2 + $0xe8] sm:$0xff] %v814
    %879 = vst [vmem:[#allocation2 + $0xf0] sm:$0xff] %v815
    %880 = vst [vmem:[#allocation2 + $0xf8] sm:$0xff] %v816
    %881 = vst [vmem:[#allocation2 + $0x100] sm:$0xff] %v817
    %882 = vst [vmem:[#allocation2 + $0x108] sm:$0xff] %v818
    %883 = vst [vmem:[#allocation2 + $0x110] sm:$0xff] %v819
    %884 = vst [vmem:[#allocation2 + $0x118] sm:$0xff] %v820
    %885 = vst [vmem:[#allocation2 + $0x120] sm:$0xff] %v821
    %886 = vst [vmem:[#allocation2 + $0x128] sm:$0xff] %v822
    %887 = vst [vmem:[#allocation2 + $0x130] sm:$0xff] %v823
    %888 = vst [vmem:[#allocation2 + $0x138] sm:$0xff] %v824
    %889 = vst [vmem:[#allocation2 + $0x140] sm:$0xff] %v825
    %890 = vst [vmem:[#allocation2 + $0x148] sm:$0xff] %v826
    %891 = vst [vmem:[#allocation2 + $0x150] sm:$0xff] %v827
    %892 = vst [vmem:[#allocation2 + $0x158] sm:$0xff] %v828
    %893 = vst [vmem:[#allocation2 + $0x160] sm:$0xff] %v829
    %894 = vst [vmem:[#allocation2 + $0x168] sm:$0xff] %v830
    %895 = vst [vmem:[#allocation2 + $0x170] sm:$0xff] %v831
    %896 = vst [vmem:[#allocation2 + $0x178] sm:$0xff] %v832
    %897 = vst [vmem:[#allocation2 + $0x180] sm:$0xff] %v833
    %898 = vst [vmem:[#allocation2 + $0x188] sm:$0xff] %v834
    %899 = vst [vmem:[#allocation2 + $0x190] sm:$0xff] %v835
    %900 = vst [vmem:[#allocation2 + $0x198] sm:$0xff] %v836
    %901 = vst [vmem:[#allocation2 + $0x1a0] sm:$0xff] %v837
    %902 = vst [vmem:[#allocation2 + $0x1a8] sm:$0xff] %v838
    %903 = vst [vmem:[#allocation2 + $0x1b0] sm:$0xff] %v839
    %904 = vst [vmem:[#allocation2 + $0x1b8] sm:$0xff] %v840
    %905 = vst [vmem:[#allocation2 + $0x1c0] sm:$0xff] %v841
    %906 = vst [vmem:[#allocation2 + $0x1c8] sm:$0xff] %v842
    %907 = vst [vmem:[#allocation2 + $0x1d0] sm:$0xff] %v843
    %908 = vst [vmem:[#allocation2 + $0x1d8] sm:$0xff] %v844
    %909 = vst [vmem:[#allocation2 + $0x1e0] sm:$0xff] %v845
    %910 = vst [vmem:[#allocation2 + $0x1e8] sm:$0xff] %v846
    %911 = vst [vmem:[#allocation2 + $0x1f0] sm:$0xff] %v847
    %912 = vst [vmem:[#allocation2 + $0x1f8] sm:$0xff] %v848
    // Predicated region
    $region22: #{tpu_custom_call.1} parent=1 // pred_check
      %p913 = pneg %p19
    $region23: #{tpu_custom_call.1} parent=1 // pred_check_branch
      %915 = sbr.rel (%p913) target = $region25
    $region24: #{tpu_custom_call.1} parent=1 // pred_region
      %v916 = vld [vmem:[#allocation2] sm:$0xff]
      %v917 = vld [vmem:[#allocation2 + $0x8] sm:$0xff]
      %v918 = vld [vmem:[#allocation2 + $0x10] sm:$0xff]
      %v919 = vld [vmem:[#allocation2 + $0x18] sm:$0xff]
      %v920 = vld [vmem:[#allocation2 + $0x20] sm:$0xff]
      %v921 = vld [vmem:[#allocation2 + $0x28] sm:$0xff]
      %v922 = vld [vmem:[#allocation2 + $0x30] sm:$0xff]
      %v923 = vld [vmem:[#allocation2 + $0x38] sm:$0xff]
      %v924 = vld [vmem:[#allocation2 + $0x40] sm:$0xff]
      %v925 = vld [vmem:[#allocation2 + $0x48] sm:$0xff]
      %v926 = vld [vmem:[#allocation2 + $0x50] sm:$0xff]
      %v927 = vld [vmem:[#allocation2 + $0x58] sm:$0xff]
      %v928 = vld [vmem:[#allocation2 + $0x60] sm:$0xff]
      %v929 = vld [vmem:[#allocation2 + $0x68] sm:$0xff]
      %v930 = vld [vmem:[#allocation2 + $0x70] sm:$0xff]
      %v931 = vld [vmem:[#allocation2 + $0x78] sm:$0xff]
      %v932 = vld [vmem:[#allocation2 + $0x80] sm:$0xff]
      %v933 = vld [vmem:[#allocation2 + $0x88] sm:$0xff]
      %v934 = vld [vmem:[#allocation2 + $0x90] sm:$0xff]
      %v935 = vld [vmem:[#allocation2 + $0x98] sm:$0xff]
      %v936 = vld [vmem:[#allocation2 + $0xa0] sm:$0xff]
      %v937 = vld [vmem:[#allocation2 + $0xa8] sm:$0xff]
      %v938 = vld [vmem:[#allocation2 + $0xb0] sm:$0xff]
      %v939 = vld [vmem:[#allocation2 + $0xb8] sm:$0xff]
      %v940 = vld [vmem:[#allocation2 + $0xc0] sm:$0xff]
      %v941 = vld [vmem:[#allocation2 + $0xc8] sm:$0xff]
      %v942 = vld [vmem:[#allocation2 + $0xd0] sm:$0xff]
      %v943 = vld [vmem:[#allocation2 + $0xd8] sm:$0xff]
      %v944 = vld [vmem:[#allocation2 + $0xe0] sm:$0xff]
      %v945 = vld [vmem:[#allocation2 + $0xe8] sm:$0xff]
      %v946 = vld [vmem:[#allocation2 + $0xf0] sm:$0xff]
      %v947 = vld [vmem:[#allocation2 + $0xf8] sm:$0xff]
      %v948 = vld [vmem:[#allocation2 + $0x100] sm:$0xff]
      %v949 = vld [vmem:[#allocation2 + $0x108] sm:$0xff]
      %v950 = vld [vmem:[#allocation2 + $0x110] sm:$0xff]
      %v951 = vld [vmem:[#allocation2 + $0x118] sm:$0xff]
      %v952 = vld [vmem:[#allocation2 + $0x120] sm:$0xff]
      %v953 = vld [vmem:[#allocation2 + $0x128] sm:$0xff]
      %v954 = vld [vmem:[#allocation2 + $0x130] sm:$0xff]
      %v955 = vld [vmem:[#allocation2 + $0x138] sm:$0xff]
      %v956 = vld [vmem:[#allocation2 + $0x140] sm:$0xff]
      %v957 = vld [vmem:[#allocation2 + $0x148] sm:$0xff]
      %v958 = vld [vmem:[#allocation2 + $0x150] sm:$0xff]
      %v959 = vld [vmem:[#allocation2 + $0x158] sm:$0xff]
      %v960 = vld [vmem:[#allocation2 + $0x160] sm:$0xff]
      %v961 = vld [vmem:[#allocation2 + $0x168] sm:$0xff]
      %v962 = vld [vmem:[#allocation2 + $0x170] sm:$0xff]
      %v963 = vld [vmem:[#allocation2 + $0x178] sm:$0xff]
      %v964 = vld [vmem:[#allocation2 + $0x180] sm:$0xff]
      %v965 = vld [vmem:[#allocation2 + $0x188] sm:$0xff]
      %v966 = vld [vmem:[#allocation2 + $0x190] sm:$0xff]
      %v967 = vld [vmem:[#allocation2 + $0x198] sm:$0xff]
      %v968 = vld [vmem:[#allocation2 + $0x1a0] sm:$0xff]
      %v969 = vld [vmem:[#allocation2 + $0x1a8] sm:$0xff]
      %v970 = vld [vmem:[#allocation2 + $0x1b0] sm:$0xff]
      %v971 = vld [vmem:[#allocation2 + $0x1b8] sm:$0xff]
      %v972 = vld [vmem:[#allocation2 + $0x1c0] sm:$0xff]
      %v973 = vld [vmem:[#allocation2 + $0x1c8] sm:$0xff]
      %v974 = vld [vmem:[#allocation2 + $0x1d0] sm:$0xff]
      %v975 = vld [vmem:[#allocation2 + $0x1d8] sm:$0xff]
      %v976 = vld [vmem:[#allocation2 + $0x1e0] sm:$0xff]
      %v977 = vld [vmem:[#allocation2 + $0x1e8] sm:$0xff]
      %v978 = vld [vmem:[#allocation2 + $0x1f0] sm:$0xff]
      %v979 = vld [vmem:[#allocation2 + $0x1f8] sm:$0xff]
      %v980 = vld [vmem:[%s2] sm:$0x1]
      %v982 = vlaneseq
      %v983 = vshrl.u32 %v982, 7
      %v984 = vsub.s32 0, %v983
      %v985 = vrot.slane %v980, %v984
      %v987 = vmul.f32 %v916, %v985
      %v988 = vmul.f32 %v917, %v985
      %v989 = vmul.f32 %v918, %v985
      %v990 = vmul.f32 %v919, %v985
      %v991 = vmul.f32 %v920, %v985
      %v992 = vmul.f32 %v921, %v985
      %v993 = vmul.f32 %v922, %v985
      %v994 = vmul.f32 %v923, %v985
      %v995 = vmul.f32 %v924, %v985
      %v996 = vmul.f32 %v925, %v985
      %v997 = vmul.f32 %v926, %v985
      %v998 = vmul.f32 %v927, %v985
      %v999 = vmul.f32 %v928, %v985
      %v1000 = vmul.f32 %v929, %v985
      %v1001 = vmul.f32 %v930, %v985
      %v1002 = vmul.f32 %v931, %v985
      %v1003 = vmul.f32 %v932, %v985
      %v1004 = vmul.f32 %v933, %v985
      %v1005 = vmul.f32 %v934, %v985
      %v1006 = vmul.f32 %v935, %v985
      %v1007 = vmul.f32 %v936, %v985
      %v1008 = vmul.f32 %v937, %v985
      %v1009 = vmul.f32 %v938, %v985
      %v1010 = vmul.f32 %v939, %v985
      %v1011 = vmul.f32 %v940, %v985
      %v1012 = vmul.f32 %v941, %v985
      %v1013 = vmul.f32 %v942, %v985
      %v1014 = vmul.f32 %v943, %v985
      %v1015 = vmul.f32 %v944, %v985
      %v1016 = vmul.f32 %v945, %v985
      %v1017 = vmul.f32 %v946, %v985
      %v1018 = vmul.f32 %v947, %v985
      %v1019 = vmul.f32 %v948, %v985
      %v1020 = vmul.f32 %v949, %v985
      %v1021 = vmul.f32 %v950, %v985
      %v1022 = vmul.f32 %v951, %v985
      %v1023 = vmul.f32 %v952, %v985
      %v1024 = vmul.f32 %v953, %v985
      %v1025 = vmul.f32 %v954, %v985
      %v1026 = vmul.f32 %v955, %v985
      %v1027 = vmul.f32 %v956, %v985
      %v1028 = vmul.f32 %v957, %v985
      %v1029 = vmul.f32 %v958, %v985
      %v1030 = vmul.f32 %v959, %v985
      %v1031 = vmul.f32 %v960, %v985
      %v1032 = vmul.f32 %v961, %v985
      %v1033 = vmul.f32 %v962, %v985
      %v1034 = vmul.f32 %v963, %v985
      %v1035 = vmul.f32 %v964, %v985
      %v1036 = vmul.f32 %v965, %v985
      %v1037 = vmul.f32 %v966, %v985
      %v1038 = vmul.f32 %v967, %v985
      %v1039 = vmul.f32 %v968, %v985
      %v1040 = vmul.f32 %v969, %v985
      %v1041 = vmul.f32 %v970, %v985
      %v1042 = vmul.f32 %v971, %v985
      %v1043 = vmul.f32 %v972, %v985
      %v1044 = vmul.f32 %v973, %v985
      %v1045 = vmul.f32 %v974, %v985
      %v1046 = vmul.f32 %v975, %v985
      %v1047 = vmul.f32 %v976, %v985
      %v1048 = vmul.f32 %v977, %v985
      %v1049 = vmul.f32 %v978, %v985
      %v1050 = vmul.f32 %v979, %v985
      %v1051 = vld [vmem:[%s3] sm:$0x1]
      %v1053 = vlaneseq
      %v1054 = vshrl.u32 %v1053, 7
      %v1055 = vsub.s32 0, %v1054
      %v1056 = vrot.slane %v1051, %v1055
      %v1058 = vadd.f32 %v987, %v1056
      %v1059 = vadd.f32 %v988, %v1056
      %v1060 = vadd.f32 %v989, %v1056
      %v1061 = vadd.f32 %v990, %v1056
      %v1062 = vadd.f32 %v991, %v1056
      %v1063 = vadd.f32 %v992, %v1056
      %v1064 = vadd.f32 %v993, %v1056
      %v1065 = vadd.f32 %v994, %v1056
      %v1066 = vadd.f32 %v995, %v1056
      %v1067 = vadd.f32 %v996, %v1056
      %v1068 = vadd.f32 %v997, %v1056
      %v1069 = vadd.f32 %v998, %v1056
      %v1070 = vadd.f32 %v999, %v1056
      %v1071 = vadd.f32 %v1000, %v1056
      %v1072 = vadd.f32 %v1001, %v1056
      %v1073 = vadd.f32 %v1002, %v1056
      %v1074 = vadd.f32 %v1003, %v1056
      %v1075 = vadd.f32 %v1004, %v1056
      %v1076 = vadd.f32 %v1005, %v1056
      %v1077 = vadd.f32 %v1006, %v1056
      %v1078 = vadd.f32 %v1007, %v1056
      %v1079 = vadd.f32 %v1008, %v1056
      %v1080 = vadd.f32 %v1009, %v1056
      %v1081 = vadd.f32 %v1010, %v1056
      %v1082 = vadd.f32 %v1011, %v1056
      %v1083 = vadd.f32 %v1012, %v1056
      %v1084 = vadd.f32 %v1013, %v1056
      %v1085 = vadd.f32 %v1014, %v1056
      %v1086 = vadd.f32 %v1015, %v1056
      %v1087 = vadd.f32 %v1016, %v1056
      %v1088 = vadd.f32 %v1017, %v1056
      %v1089 = vadd.f32 %v1018, %v1056
      %v1090 = vadd.f32 %v1019, %v1056
      %v1091 = vadd.f32 %v1020, %v1056
      %v1092 = vadd.f32 %v1021, %v1056
      %v1093 = vadd.f32 %v1022, %v1056
      %v1094 = vadd.f32 %v1023, %v1056
      %v1095 = vadd.f32 %v1024, %v1056
      %v1096 = vadd.f32 %v1025, %v1056
      %v1097 = vadd.f32 %v1026, %v1056
      %v1098 = vadd.f32 %v1027, %v1056
      %v1099 = vadd.f32 %v1028, %v1056
      %v1100 = vadd.f32 %v1029, %v1056
      %v1101 = vadd.f32 %v1030, %v1056
      %v1102 = vadd.f32 %v1031, %v1056
      %v1103 = vadd.f32 %v1032, %v1056
      %v1104 = vadd.f32 %v1033, %v1056
      %v1105 = vadd.f32 %v1034, %v1056
      %v1106 = vadd.f32 %v1035, %v1056
      %v1107 = vadd.f32 %v1036, %v1056
      %v1108 = vadd.f32 %v1037, %v1056
      %v1109 = vadd.f32 %v1038, %v1056
      %v1110 = vadd.f32 %v1039, %v1056
      %v1111 = vadd.f32 %v1040, %v1056
      %v1112 = vadd.f32 %v1041, %v1056
      %v1113 = vadd.f32 %v1042, %v1056
      %v1114 = vadd.f32 %v1043, %v1056
      %v1115 = vadd.f32 %v1044, %v1056
      %v1116 = vadd.f32 %v1045, %v1056
      %v1117 = vadd.f32 %v1046, %v1056
      %v1118 = vadd.f32 %v1047, %v1056
      %v1119 = vadd.f32 %v1048, %v1056
      %v1120 = vadd.f32 %v1049, %v1056
      %v1121 = vadd.f32 %v1050, %v1056
      %v1122 = vmax.f32 %v1058, 0.0
      %v1123 = vmax.f32 %v1059, 0.0
      %v1124 = vmax.f32 %v1060, 0.0
      %v1125 = vmax.f32 %v1061, 0.0
      %v1126 = vmax.f32 %v1062, 0.0
      %v1127 = vmax.f32 %v1063, 0.0
      %v1128 = vmax.f32 %v1064, 0.0
      %v1129 = vmax.f32 %v1065, 0.0
      %v1130 = vmax.f32 %v1066, 0.0
      %v1131 = vmax.f32 %v1067, 0.0
      %v1132 = vmax.f32 %v1068, 0.0
      %v1133 = vmax.f32 %v1069, 0.0
      %v1134 = vmax.f32 %v1070, 0.0
      %v1135 = vmax.f32 %v1071, 0.0
      %v1136 = vmax.f32 %v1072, 0.0
      %v1137 = vmax.f32 %v1073, 0.0
      %v1138 = vmax.f32 %v1074, 0.0
      %v1139 = vmax.f32 %v1075, 0.0
      %v1140 = vmax.f32 %v1076, 0.0
      %v1141 = vmax.f32 %v1077, 0.0
      %v1142 = vmax.f32 %v1078, 0.0
      %v1143 = vmax.f32 %v1079, 0.0
      %v1144 = vmax.f32 %v1080, 0.0
      %v1145 = vmax.f32 %v1081, 0.0
      %v1146 = vmax.f32 %v1082, 0.0
      %v1147 = vmax.f32 %v1083, 0.0
      %v1148 = vmax.f32 %v1084, 0.0
      %v1149 = vmax.f32 %v1085, 0.0
      %v1150 = vmax.f32 %v1086, 0.0
      %v1151 = vmax.f32 %v1087, 0.0
      %v1152 = vmax.f32 %v1088, 0.0
      %v1153 = vmax.f32 %v1089, 0.0
      %v1154 = vmax.f32 %v1090, 0.0
      %v1155 = vmax.f32 %v1091, 0.0
      %v1156 = vmax.f32 %v1092, 0.0
      %v1157 = vmax.f32 %v1093, 0.0
      %v1158 = vmax.f32 %v1094, 0.0
      %v1159 = vmax.f32 %v1095, 0.0
      %v1160 = vmax.f32 %v1096, 0.0
      %v1161 = vmax.f32 %v1097, 0.0
      %v1162 = vmax.f32 %v1098, 0.0
      %v1163 = vmax.f32 %v1099, 0.0
      %v1164 = vmax.f32 %v1100, 0.0
      %v1165 = vmax.f32 %v1101, 0.0
      %v1166 = vmax.f32 %v1102, 0.0
      %v1167 = vmax.f32 %v1103, 0.0
      %v1168 = vmax.f32 %v1104, 0.0
      %v1169 = vmax.f32 %v1105, 0.0
      %v1170 = vmax.f32 %v1106, 0.0
      %v1171 = vmax.f32 %v1107, 0.0
      %v1172 = vmax.f32 %v1108, 0.0
      %v1173 = vmax.f32 %v1109, 0.0
      %v1174 = vmax.f32 %v1110, 0.0
      %v1175 = vmax.f32 %v1111, 0.0
      %v1176 = vmax.f32 %v1112, 0.0
      %v1177 = vmax.f32 %v1113, 0.0
      %v1178 = vmax.f32 %v1114, 0.0
      %v1179 = vmax.f32 %v1115, 0.0
      %v1180 = vmax.f32 %v1116, 0.0
      %v1181 = vmax.f32 %v1117, 0.0
      %v1182 = vmax.f32 %v1118, 0.0
      %v1183 = vmax.f32 %v1119, 0.0
      %v1184 = vmax.f32 %v1120, 0.0
      %v1185 = vmax.f32 %v1121, 0.0
      %1186 = vst [vmem:[#allocation3] sm:$0xff] %v1122
      %1187 = vst [vmem:[#allocation3 + $0x8] sm:$0xff] %v1123
      %1188 = vst [vmem:[#allocation3 + $0x10] sm:$0xff] %v1124
      %1189 = vst [vmem:[#allocation3 + $0x18] sm:$0xff] %v1125
      %1190 = vst [vmem:[#allocation3 + $0x20] sm:$0xff] %v1126
      %1191 = vst [vmem:[#allocation3 + $0x28] sm:$0xff] %v1127
      %1192 = vst [vmem:[#allocation3 + $0x30] sm:$0xff] %v1128
      %1193 = vst [vmem:[#allocation3 + $0x38] sm:$0xff] %v1129
      %1194 = vst [vmem:[#allocation3 + $0x40] sm:$0xff] %v1130
      %1195 = vst [vmem:[#allocation3 + $0x48] sm:$0xff] %v1131
      %1196 = vst [vmem:[#allocation3 + $0x50] sm:$0xff] %v1132
      %1197 = vst [vmem:[#allocation3 + $0x58] sm:$0xff] %v1133
      %1198 = vst [vmem:[#allocation3 + $0x60] sm:$0xff] %v1134
      %1199 = vst [vmem:[#allocation3 + $0x68] sm:$0xff] %v1135
      %1200 = vst [vmem:[#allocation3 + $0x70] sm:$0xff] %v1136
      %1201 = vst [vmem:[#allocation3 + $0x78] sm:$0xff] %v1137
      %1202 = vst [vmem:[#allocation3 + $0x80] sm:$0xff] %v1138
      %1203 = vst [vmem:[#allocation3 + $0x88] sm:$0xff] %v1139
      %1204 = vst [vmem:[#allocation3 + $0x90] sm:$0xff] %v1140
      %1205 = vst [vmem:[#allocation3 + $0x98] sm:$0xff] %v1141
      %1206 = vst [vmem:[#allocation3 + $0xa0] sm:$0xff] %v1142
      %1207 = vst [vmem:[#allocation3 + $0xa8] sm:$0xff] %v1143
      %1208 = vst [vmem:[#allocation3 + $0xb0] sm:$0xff] %v1144
      %1209 = vst [vmem:[#allocation3 + $0xb8] sm:$0xff] %v1145
      %1210 = vst [vmem:[#allocation3 + $0xc0] sm:$0xff] %v1146
      %1211 = vst [vmem:[#allocation3 + $0xc8] sm:$0xff] %v1147
      %1212 = vst [vmem:[#allocation3 + $0xd0] sm:$0xff] %v1148
      %1213 = vst [vmem:[#allocation3 + $0xd8] sm:$0xff] %v1149
      %1214 = vst [vmem:[#allocation3 + $0xe0] sm:$0xff] %v1150
      %1215 = vst [vmem:[#allocation3 + $0xe8] sm:$0xff] %v1151
      %1216 = vst [vmem:[#allocation3 + $0xf0] sm:$0xff] %v1152
      %1217 = vst [vmem:[#allocation3 + $0xf8] sm:$0xff] %v1153
      %1218 = vst [vmem:[#allocation3 + $0x100] sm:$0xff] %v1154
      %1219 = vst [vmem:[#allocation3 + $0x108] sm:$0xff] %v1155
      %1220 = vst [vmem:[#allocation3 + $0x110] sm:$0xff] %v1156
      %1221 = vst [vmem:[#allocation3 + $0x118] sm:$0xff] %v1157
      %1222 = vst [vmem:[#allocation3 + $0x120] sm:$0xff] %v1158
      %1223 = vst [vmem:[#allocation3 + $0x128] sm:$0xff] %v1159
      %1224 = vst [vmem:[#allocation3 + $0x130] sm:$0xff] %v1160
      %1225 = vst [vmem:[#allocation3 + $0x138] sm:$0xff] %v1161
      %1226 = vst [vmem:[#allocation3 + $0x140] sm:$0xff] %v1162
      %1227 = vst [vmem:[#allocation3 + $0x148] sm:$0xff] %v1163
      %1228 = vst [vmem:[#allocation3 + $0x150] sm:$0xff] %v1164
      %1229 = vst [vmem:[#allocation3 + $0x158] sm:$0xff] %v1165
      %1230 = vst [vmem:[#allocation3 + $0x160] sm:$0xff] %v1166
      %1231 = vst [vmem:[#allocation3 + $0x168] sm:$0xff] %v1167
      %1232 = vst [vmem:[#allocation3 + $0x170] sm:$0xff] %v1168
      %1233 = vst [vmem:[#allocation3 + $0x178] sm:$0xff] %v1169
      %1234 = vst [vmem:[#allocation3 + $0x180] sm:$0xff] %v1170
      %1235 = vst [vmem:[#allocation3 + $0x188] sm:$0xff] %v1171
      %1236 = vst [vmem:[#allocation3 + $0x190] sm:$0xff] %v1172
      %1237 = vst [vmem:[#allocation3 + $0x198] sm:$0xff] %v1173
      %1238 = vst [vmem:[#allocation3 + $0x1a0] sm:$0xff] %v1174
      %1239 = vst [vmem:[#allocation3 + $0x1a8] sm:$0xff] %v1175
      %1240 = vst [vmem:[#allocation3 + $0x1b0] sm:$0xff] %v1176
      %1241 = vst [vmem:[#allocation3 + $0x1b8] sm:$0xff] %v1177
      %1242 = vst [vmem:[#allocation3 + $0x1c0] sm:$0xff] %v1178
      %1243 = vst [vmem:[#allocation3 + $0x1c8] sm:$0xff] %v1179
      %1244 = vst [vmem:[#allocation3 + $0x1d0] sm:$0xff] %v1180
      %1245 = vst [vmem:[#allocation3 + $0x1d8] sm:$0xff] %v1181
      %1246 = vst [vmem:[#allocation3 + $0x1e0] sm:$0xff] %v1182
      %1247 = vst [vmem:[#allocation3 + $0x1e8] sm:$0xff] %v1183
      %1248 = vst [vmem:[#allocation3 + $0x1f0] sm:$0xff] %v1184
      %1249 = vst [vmem:[#allocation3 + $0x1f8] sm:$0xff] %v1185
    $region25: #{tpu_custom_call.1} parent=1 // pred_fallthru
      _
    // Predicated region
    $region26: #{tpu_custom_call.1} parent=1 // pred_check
      _
    $region27: #{tpu_custom_call.1} parent=1 // pred_check_branch
      %1251 = sbr.rel (0) target = $region29
    $region28: #{tpu_custom_call.1} parent=1 // pred_region
      %s1253 = ssub.s32 8192, 8192
      %1254 = vsyncadd [#allocation4], %s1253
      %s1255 = sshll.u32 [#allocation3], 4
      %s1256 = int_to_ptr.vmem [resolvable:$true] %s1255
      %1261 = dma.vmem_to_hbm [thread:$0]  %s1256, 8192, %s4, [#allocation4], 128, 128, 8
    $region29: #{tpu_custom_call.1} parent=1 // pred_fallthru
      _
    // Predicated region
    $region30: #{tpu_custom_call.1} parent=1 // pred_check
      _
    $region31: #{tpu_custom_call.1} parent=1 // pred_check_branch
      %1263 = sbr.rel (0) target = $region33
    $region32: #{tpu_custom_call.1} parent=1 // pred_region
      %1264 = dma.done [#allocation4], 8192
    $region33: #{tpu_custom_call.1} parent=1 // pred_fallthru
      _
    %1265 = vsyncpa [#allocation4], 1

</llo_original>
